<compile_context>
chip_gen: v7x
topology: tpu7x:2x2x1
jax: 0.10.0
libtpu: 0.0.40
codegen_flags: <defaults>
</compile_context>

<pallas_src>
import functools

import jax
import jax.numpy as jnp
from jax.experimental import pallas as pl
from jax.experimental.pallas import tpu as pltpu


_HAS_BUFFERED = hasattr(pl, "Buffered")


def _round_up(v, m):
    return (v + m - 1) // m * m


def _tpu_gen_params():
    """Per-generation VMEM budget / cap and elementwise-dtype choice."""
    kind = ""
    try:
        kind = (jax.devices()[0].device_kind or "").lower()
    except Exception:
        pass
    if "v6" in kind:                 # v6e: 128 MiB VMEM, bf16 VPU/EUP
        return {"vmem_budget": 96 << 20, "vmem_cap": 110 << 20, "bf16_ew": True}
    if "7" in kind:                  # v7x: 64 MiB physical VMEM per TC
        return {"vmem_budget": 36 << 20, "vmem_cap": 56 << 20, "bf16_ew": True}
    if "v5" in kind:                 # v5e/v5p: 128 MiB VMEM, no bf16 VPU/EUP path
        return {"vmem_budget": 96 << 20, "vmem_cap": 110 << 20, "bf16_ew": False}
    return {"vmem_budget": 24 << 20, "vmem_cap": 48 << 20, "bf16_ew": False}


def _resident_spec(shape, single_buffer):
    """BlockSpec for a VMEM-resident operand (constant block index)."""
    idx = lambda i: (0,) * len(shape)
    if single_buffer and _HAS_BUFFERED:
        # Constant index_map => fetched once; single-buffer to halve VMEM use.
        return pl.BlockSpec(shape, idx, pipeline_mode=pl.Buffered(1))
    return pl.BlockSpec(shape, idx)


def _plan_tiles(m, per_row_bytes, fixed_bytes, gen):
    """Solve the row-tile size from the VMEM budget; derive vmem_limit_bytes."""
    avail = gen["vmem_budget"] - fixed_bytes
    tm = avail // per_row_bytes if avail > 0 else 8
    tm = int(max(min(tm, 2048), 8))
    if m >= 1024:
        # Keep >= 4 grid steps when M allows: both v7x TensorCores get work and
        # each still has >= 2 steps for DMA/compute overlap.
        tm = min(tm, _round_up(pl.cdiv(m, 4), 8))
    if m <= tm:
        tm = m                       # full-extent block (exempt from 8-row rule)
    else:
        tm = max((tm // 8) * 8, 8)
    footprint = fixed_bytes + per_row_bytes * tm
    vmem_limit = int(min(max(int(footprint * 1.3) + (4 << 20), 32 << 20),
                         gen["vmem_cap"]))
    return tm, vmem_limit


# ----------------------------------------------------------------------------
# Fused kernel:  o = (fn(x @ Win + bin)) @ Wout + bout      (all in one tile)
# ----------------------------------------------------------------------------
def _fused_kernel(fn, ew_dtype, x_ref, w_in_ref, b_in_ref, w_out_ref, b_out_ref,
                  o_ref):
    x = x_ref[...]
    if x.dtype != jnp.bfloat16:
        x = x.astype(jnp.bfloat16)                       # MXU input dtype
    h = jnp.dot(x, w_in_ref[...], preferred_element_type=jnp.float32)
    # Elementwise chain in bf16 on v6e/v7x, f32 on v5e; MXU accumulation is f32.
    h = h.astype(ew_dtype) + b_in_ref[...].astype(ew_dtype)
    h = fn(h)                                            # fused elementwise fn (EUP/VPU)
    y = jnp.dot(h.astype(jnp.bfloat16), w_out_ref[...],
                preferred_element_type=jnp.float32)
    o_ref[...] = (y + b_out_ref[...]).astype(o_ref.dtype)


def fused_project_in_out(x, w_in_t, b_in_p, w_out_t, b_out_row, fn, dim_in,
                         ew_dtype, gen, single_buffer_weights):
    """x: (..., K).  w_in_t: (K, Hp) bf16.  w_out_t: (Hp, dim_in) bf16.
    b_in_p: (1, Hp) f32.  b_out_row: (1, dim_in) f32.  Returns (..., dim_in) f32."""
    lead = x.shape[:-1]
    k = x.shape[-1]
    x2d = x.reshape((-1, k))
    m = x2d.shape[0]
    hp = w_in_t.shape[1]
    n_out = w_out_t.shape[1]          # == dim_in (unpadded => no post-kernel slice)
    x_bytes = x2d.dtype.itemsize

    wmult = 1 if (single_buffer_weights and _HAS_BUFFERED) else 2
    fixed = wmult * ((k * hp + hp * n_out) * 2 + (hp + n_out) * 4)
    # x/out double-buffered + (tm, Hp) f32 intermediate and its bf16 copy.
    per_row = 2 * k * x_bytes + 2 * n_out * 4 + hp * 6
    tm, vmem_limit = _plan_tiles(m, per_row, fixed, gen)

    cost = pl.CostEstimate(
        flops=2 * m * (k * hp + hp * n_out),
        transcendentals=m * hp,
        bytes_accessed=(x2d.size * x_bytes
                        + (w_in_t.size + w_out_t.size) * 2
                        + (b_in_p.size + b_out_row.size) * 4
                        + m * n_out * 4),
    )

    y2d = pl.pallas_call(
        functools.partial(_fused_kernel, fn, ew_dtype),
        out_shape=jax.ShapeDtypeStruct((m, n_out), jnp.float32),
        grid=(pl.cdiv(m, tm),),
        in_specs=[
            pl.BlockSpec((tm, k), lambda i: (i, 0)),             # x tile (streams)
            _resident_spec((k, hp), single_buffer_weights),      # Win  (VMEM resident)
            _resident_spec((1, hp), single_buffer_weights),      # bin
            _resident_spec((hp, n_out), single_buffer_weights),  # Wout (VMEM resident)
            _resident_spec((1, n_out), single_buffer_weights),   # bout
        ],
        out_specs=pl.BlockSpec((tm, n_out), lambda i: (i, 0)),
        compiler_params=pltpu.CompilerParams(
            dimension_semantics=("parallel",),
            vmem_limit_bytes=vmem_limit),
        cost_estimate=cost,
    )(x2d, w_in_t, b_in_p, w_out_t, b_out_row)
    return y2d.reshape(lead + (dim_in,))


# ----------------------------------------------------------------------------
# Tiled standalone linear (fallback path when fn cannot be fused)
# ----------------------------------------------------------------------------
def _linear_kernel(x_ref, w_ref, b_ref, o_ref):
    x = x_ref[...]
    if x.dtype != jnp.bfloat16:
        x = x.astype(jnp.bfloat16)
    acc = jnp.dot(x, w_ref[...], preferred_element_type=jnp.float32)
    o_ref[...] = (acc + b_ref[...]).astype(o_ref.dtype)


def pallas_linear(x, w_t, b_row, gen, single_buffer_weights,
                  out_dtype=jnp.float32):
    """x: (..., K); w_t: (K, N) bf16 (pre-transposed); b_row: (1, N) f32."""
    lead = x.shape[:-1]
    k = x.shape[-1]
    n = w_t.shape[1]
    x2d = x.reshape((-1, k))
    m = x2d.shape[0]
    x_bytes = x2d.dtype.itemsize
    out_bytes = jnp.dtype(out_dtype).itemsize

    wmult = 1 if (single_buffer_weights and _HAS_BUFFERED) else 2
    fixed = wmult * (k * n * 2 + n * 4)
    per_row = 2 * k * x_bytes + 2 * n * out_bytes + n * 4
    tm, vmem_limit = _plan_tiles(m, per_row, fixed, gen)

    cost = pl.CostEstimate(
        flops=2 * m * k * n,
        transcendentals=0,
        bytes_accessed=x2d.size * x_bytes + w_t.size * 2 + n * 4
        + m * n * out_bytes)

    y2d = pl.pallas_call(
        _linear_kernel,
        out_shape=jax.ShapeDtypeStruct((m, n), out_dtype),
        grid=(pl.cdiv(m, tm),),
        in_specs=[
            pl.BlockSpec((tm, k), lambda i: (i, 0)),
            _resident_spec((k, n), single_buffer_weights),
            _resident_spec((1, n), single_buffer_weights),
        ],
        out_specs=pl.BlockSpec((tm, n), lambda i: (i, 0)),
        compiler_params=pltpu.CompilerParams(
            dimension_semantics=("parallel",),
            vmem_limit_bytes=vmem_limit),
        cost_estimate=cost,
    )(x2d, w_t, b_row)
    return y2d.reshape(lead + (n,))


# ----------------------------------------------------------------------------
# ProjectInOut module (PyTorch nn.Linear default init on f32 masters)
# ----------------------------------------------------------------------------
class ProjectInOut:
    """Pallas equivalent of the PyTorch ProjectInOut module.

    fn_is_elementwise=True (default) enables the fused single-kernel path; the
    wrapped fn must then be elementwise over the last axis (activation-like)
    with fn(0) finite (padded hidden columns see zeros; Wout's padded rows are
    zero).  Token-mixing / last-axis-reducing fns must pass
    fn_is_elementwise=False (two Pallas linears, fn as plain JAX in between).
    Weights are cast to bf16 once (deliberate precision trade-off; matmuls
    accumulate in f32 on the MXU).
    """

    def __init__(self, dim_in, dim_out, fn, *, key, fn_is_elementwise=True,
                 single_buffer_weights=True):
        self.fn = fn
        self.fn_is_elementwise = fn_is_elementwise
        self.single_buffer_weights = single_buffer_weights
        self.dim_in = dim_in
        self.dim_out = dim_out
        self.need_projection = dim_in != dim_out
        self.gen = _tpu_gen_params()
        self.ew_dtype = jnp.bfloat16 if self.gen["bf16_ew"] else jnp.float32
        if not self.need_projection:
            return

        k1, k2, k3, k4 = jax.random.split(key, 4)
        bound_in = 1.0 / float(dim_in) ** 0.5
        bound_out = 1.0 / float(dim_out) ** 0.5
        # f32 master params in PyTorch layout: W (out, in), b (out,)
        self.w_in = jax.random.uniform(k1, (dim_out, dim_in), jnp.float32, -bound_in, bound_in)
        self.b_in = jax.random.uniform(k2, (dim_out,), jnp.float32, -bound_in, bound_in)
        self.w_out = jax.random.uniform(k3, (dim_in, dim_out), jnp.float32, -bound_out, bound_out)
        self.b_out = jax.random.uniform(k4, (dim_in,), jnp.float32, -bound_out, bound_out)

        # Fused-path params: hidden padded to a lane-dense multiple of 128;
        # Wout's padded rows are zero so fn(0) on padded columns contributes 0.
        hp = _round_up(dim_out, 128)
        self.hp = hp
        w_in_t = jnp.zeros((dim_in, hp), jnp.float32).at[:, :dim_out].set(self.w_in.T)
        w_out_t = jnp.zeros((hp, dim_in), jnp.float32).at[:dim_out, :].set(self.w_out.T)
        self.w_in_t = w_in_t.astype(jnp.bfloat16)           # (K, Hp)
        self.w_out_t = w_out_t.astype(jnp.bfloat16)         # (Hp, dim_in): N unpadded => no slice pass
        self.b_in_p = jnp.zeros((1, hp), jnp.float32).at[0, :dim_out].set(self.b_in)
        self.b_out_row = self.b_out.reshape(1, dim_in)

        # Fallback-path params (unpadded: fn sees exactly dim_out columns).
        self.w_in_fb = self.w_in.T.astype(jnp.bfloat16)      # (K, dim_out)
        self.b_in_fb = self.b_in.reshape(1, dim_out)
        self.w_out_fb = self.w_out.T.astype(jnp.bfloat16)    # (dim_out, dim_in)
        self.b_out_fb = self.b_out_row

    def __call__(self, x, *args, **kwargs):
        if not self.need_projection:
            return self.fn(x, *args, **kwargs)
        if self.fn_is_elementwise and not args and not kwargs:
            # Fast path: project_in -> fn -> project_out in ONE kernel.
            return fused_project_in_out(
                x, self.w_in_t, self.b_in_p, self.w_out_t, self.b_out_row,
                self.fn, self.dim_in, self.ew_dtype, self.gen,
                self.single_buffer_weights)
        # TODO(synk): a general wrapped fn (e.g. a token-mixing attention block)
        # cannot be fused into a row-tiled kernel; run it as plain JAX between
        # two Pallas linears (bf16 intermediate halves the HBM round-trips).
        h = pallas_linear(x, self.w_in_fb, self.b_in_fb, self.gen,
                          self.single_buffer_weights, out_dtype=jnp.bfloat16)
        h = self.fn(h, *args, **kwargs)
        return pallas_linear(h, self.w_out_fb, self.b_out_fb, self.gen,
                             self.single_buffer_weights, out_dtype=jnp.float32)


if __name__ == "__main__":
    # Small shapes consistent with the forward: token sequence (B, N, dim_in).
    B, N, DIM_IN, DIM_OUT = 2, 8, 32, 64

    key = jax.random.PRNGKey(0)
    k_x, k_params = jax.random.split(key)
    x = jax.random.normal(k_x, (B, N, DIM_IN), jnp.float32)

    # Stand-in for the wrapped `fn` (elementwise -> fusable into the kernel).
    # jax.nn.gelu defaults to the tanh approximation (single EUP transcendental).
    fn = jax.nn.gelu

    def run(module, xv):
        try:
            return jax.block_until_ready(jax.jit(lambda v: module(v))(xv))
        except Exception:
            # Graceful degradation if this jax build rejects single-buffered
            # (pl.Buffered(1)) resident-weight specs.
            module.single_buffer_weights = False
            return jax.block_until_ready(jax.jit(lambda v: module(v))(xv))

    module = ProjectInOut(DIM_IN, DIM_OUT, fn, key=k_params)
    y = run(module, x)
    assert y.shape == (B, N, DIM_IN), y.shape

    # Reference mimicking kernel numerics (bf16 weights/activations, f32 MXU
    # accumulation, elementwise chain in the generation-selected dtype).
    ew = module.ew_dtype
    x2d = x.reshape(-1, DIM_IN)
    xb = x2d.astype(jnp.bfloat16)
    h_ref = jnp.dot(xb, module.w_in_t, preferred_element_type=jnp.float32)
    h_ref = fn(h_ref.astype(ew) + module.b_in_p.astype(ew))
    y_ref_kernel = (jnp.dot(h_ref.astype(jnp.bfloat16), module.w_out_t,
                            preferred_element_type=jnp.float32)
                    + module.b_out_row).reshape(B, N, DIM_IN)
    assert jnp.allclose(y, y_ref_kernel, atol=5e-3, rtol=5e-3), \
        float(jnp.max(jnp.abs(y - y_ref_kernel)))

    # Loose check vs the pure-f32 PyTorch-equivalent math.
    y_f32 = fn(x @ module.w_in.T + module.b_in) @ module.w_out.T + module.b_out
    assert jnp.allclose(y, y_f32, atol=3e-2, rtol=3e-2), \
        float(jnp.max(jnp.abs(y - y_f32)))

    # Exercise the non-fused fallback path (fn as plain JAX, bf16 intermediate).
    module_nf = ProjectInOut(DIM_IN, DIM_OUT, fn, key=k_params,
                             fn_is_elementwise=False)
    y_nf = run(module_nf, x)
    h_fb = jnp.dot(xb, module_nf.w_in_fb, preferred_element_type=jnp.float32)
    h_fb = fn((h_fb + module_nf.b_in_fb).astype(jnp.bfloat16))
    y_nf_ref = (jnp.dot(h_fb.astype(jnp.bfloat16), module_nf.w_out_fb,
                        preferred_element_type=jnp.float32)
                + module_nf.b_out_fb).reshape(B, N, DIM_IN)
    assert jnp.allclose(y_nf, y_nf_ref, atol=5e-3, rtol=5e-3), \
        float(jnp.max(jnp.abs(y_nf - y_nf_ref)))

    # Identity path (dim_in == dim_out): no projection kernels at all.
    module_id = ProjectInOut(DIM_IN, DIM_IN, fn, key=k_params)
    y_id = jax.block_until_ready(jax.jit(lambda v: module_id(v))(x))
    assert jnp.allclose(y_id, fn(x), atol=1e-6, rtol=1e-6)

    print("KERNEL_OK")
</pallas_src>

<mosaic_0001>
module attributes {stable_mosaic.version = 11 : i64} {
  func.func @_fused_kernel(%arg0: i32, %arg1: memref<16x32xf32, #tpu.memory_space<vmem>>, %arg2: memref<32x128xbf16, #tpu.memory_space<vmem>>, %arg3: memref<1x128xf32, #tpu.memory_space<vmem>>, %arg4: memref<128x32xbf16, #tpu.memory_space<vmem>>, %arg5: memref<1x32xf32, #tpu.memory_space<vmem>>, %arg6: memref<16x32xf32, #tpu.memory_space<vmem>>) attributes {dimension_semantics = [#tpu.dimension_semantics<parallel>], iteration_bounds = array<i64: 1>, scalar_prefetch = 0 : i64, scratch_operands = 0 : i64, tpu.core_type = #tpu.core_type<tc>, window_params = [{transform_indices = @transform_0, window_bounds = array<i64: 16, 32>}, {pipeline_mode = #tpu.pipeline_mode<synchronous>, transform_indices = @transform_1, window_bounds = array<i64: 32, 128>}, {pipeline_mode = #tpu.pipeline_mode<synchronous>, transform_indices = @transform_2, window_bounds = array<i64: 1, 128>}, {pipeline_mode = #tpu.pipeline_mode<synchronous>, transform_indices = @transform_3, window_bounds = array<i64: 128, 32>}, {pipeline_mode = #tpu.pipeline_mode<synchronous>, transform_indices = @transform_4, window_bounds = array<i64: 1, 32>}, {transform_indices = @transform_5, window_bounds = array<i64: 16, 32>}]} {
    %c0 = arith.constant 0 : index
    %c0_0 = arith.constant 0 : index
    %0 = vector.load %arg1[%c0, %c0_0] : memref<16x32xf32, #tpu.memory_space<vmem>>, vector<16x32xf32>
    %1 = arith.truncf %0 : vector<16x32xf32> to vector<16x32xbf16>
    %c0_1 = arith.constant 0 : index
    %c0_2 = arith.constant 0 : index
    %2 = vector.load %arg2[%c0_1, %c0_2] : memref<32x128xbf16, #tpu.memory_space<vmem>>, vector<32x128xbf16>
    %cst = arith.constant dense<0.000000e+00> : vector<16x128xf32>
    %3 = tpu.matmul %1, %2, %cst {dimension_numbers = #tpu.dot_dimension_numbers<[1], [0], [0], [1], [0, 0, 1, 1], [], []>} : vector<16x32xbf16>, vector<32x128xbf16>, vector<16x128xf32> -> vector<16x128xf32>
    %c0_3 = arith.constant 0 : index
    %c0_4 = arith.constant 0 : index
    %4 = vector.load %arg3[%c0_3, %c0_4] : memref<1x128xf32, #tpu.memory_space<vmem>>, vector<1x128xf32>
    %5 = vector.broadcast %4 : vector<1x128xf32> to vector<16x128xf32>
    %6 = arith.addf %3, %5 : vector<16x128xf32>
    %7 = arith.mulf %6, %6 : vector<16x128xf32>
    %8 = arith.mulf %6, %7 : vector<16x128xf32>
    %cst_5 = arith.constant 4.471500e-02 : f32
    %9 = vector.broadcast %cst_5 : f32 to vector<16x128xf32>
    %10 = arith.mulf %9, %8 : vector<16x128xf32>
    %11 = arith.addf %6, %10 : vector<16x128xf32>
    %cst_6 = arith.constant 0.797884583 : f32
    %12 = vector.broadcast %cst_6 : f32 to vector<16x128xf32>
    %13 = arith.mulf %12, %11 : vector<16x128xf32>
    %14 = math.tanh %13 : vector<16x128xf32>
    %cst_7 = arith.constant 1.000000e+00 : f32
    %15 = vector.broadcast %cst_7 : f32 to vector<16x128xf32>
    %16 = arith.addf %15, %14 : vector<16x128xf32>
    %cst_8 = arith.constant 5.000000e-01 : f32
    %17 = vector.broadcast %cst_8 : f32 to vector<16x128xf32>
    %18 = arith.mulf %17, %16 : vector<16x128xf32>
    %19 = arith.mulf %6, %18 : vector<16x128xf32>
    %20 = arith.truncf %19 : vector<16x128xf32> to vector<16x128xbf16>
    %c0_9 = arith.constant 0 : index
    %c0_10 = arith.constant 0 : index
    %21 = vector.load %arg4[%c0_9, %c0_10] : memref<128x32xbf16, #tpu.memory_space<vmem>>, vector<128x32xbf16>
    %cst_11 = arith.constant dense<0.000000e+00> : vector<16x32xf32>
    %22 = tpu.matmul %20, %21, %cst_11 {dimension_numbers = #tpu.dot_dimension_numbers<[1], [0], [0], [1], [0, 0, 1, 1], [], []>} : vector<16x128xbf16>, vector<128x32xbf16>, vector<16x32xf32> -> vector<16x32xf32>
    %c0_12 = arith.constant 0 : index
    %c0_13 = arith.constant 0 : index
    %23 = vector.load %arg5[%c0_12, %c0_13] : memref<1x32xf32, #tpu.memory_space<vmem>>, vector<1x32xf32>
    %24 = vector.broadcast %23 : vector<1x32xf32> to vector<16x32xf32>
    %25 = arith.addf %22, %24 : vector<16x32xf32>
    %c0_14 = arith.constant 0 : index
    %c0_15 = arith.constant 0 : index
    %26 = vector.load %arg6[%c0_14, %c0_15] : memref<16x32xf32, #tpu.memory_space<vmem>>, vector<16x32xf32>
    tpu.vector_store %arg6[%c0_14, %c0_15], %25 {strides = array<i32>} : memref<16x32xf32, #tpu.memory_space<vmem>>, vector<16x32xf32>,
    return
  }
  func.func @transform_0(%arg0: i32) -> (i32, i32) {
    %c0_i32 = arith.constant 0 : i32
    %c0_i32_0 = arith.constant 0 : i32
    return %arg0, %c0_i32 : i32, i32
  }
  func.func @transform_1(%arg0: i32) -> (i32, i32) {
    %c0_i32 = arith.constant 0 : i32
    %c0_i32_0 = arith.constant 0 : i32
    %c0_i32_1 = arith.constant 0 : i32
    return %c0_i32, %c0_i32_0 : i32, i32
  }
  func.func @transform_2(%arg0: i32) -> (i32, i32) {
    %c0_i32 = arith.constant 0 : i32
    %c0_i32_0 = arith.constant 0 : i32
    %c0_i32_1 = arith.constant 0 : i32
    return %c0_i32, %c0_i32_0 : i32, i32
  }
  func.func @transform_3(%arg0: i32) -> (i32, i32) {
    %c0_i32 = arith.constant 0 : i32
    %c0_i32_0 = arith.constant 0 : i32
    %c0_i32_1 = arith.constant 0 : i32
    return %c0_i32, %c0_i32_0 : i32, i32
  }
  func.func @transform_4(%arg0: i32) -> (i32, i32) {
    %c0_i32 = arith.constant 0 : i32
    %c0_i32_0 = arith.constant 0 : i32
    %c0_i32_1 = arith.constant 0 : i32
    return %c0_i32, %c0_i32_0 : i32, i32
  }
  func.func @transform_5(%arg0: i32) -> (i32, i32) {
    %c0_i32 = arith.constant 0 : i32
    %c0_i32_0 = arith.constant 0 : i32
    return %arg0, %c0_i32 : i32, i32
  }
}

module attributes {stable_mosaic.version = 11 : i64} {
  func.func @_fused_kernel(%arg0: i32, %arg1: memref<16x32xf32, #tpu.memory_space<vmem>>, %arg2: memref<32x128xbf16, #tpu.memory_space<vmem>>, %arg3: memref<1x128xf32, #tpu.memory_space<vmem>>, %arg4: memref<128x32xbf16, #tpu.memory_space<vmem>>, %arg5: memref<1x32xf32, #tpu.memory_space<vmem>>, %arg6: memref<16x32xf32, #tpu.memory_space<vmem>>) attributes {dimension_semantics = [#tpu.dimension_semantics<parallel>], iteration_bounds = array<i64: 1>, scalar_prefetch = 0 : i64, scratch_operands = 0 : i64, tpu.core_type = #tpu.core_type<tc>, window_params = [{transform_indices = @transform_0, window_bounds = array<i64: 16, 32>}, {pipeline_mode = #tpu.pipeline_mode<synchronous>, transform_indices = @transform_1, window_bounds = array<i64: 32, 128>}, {pipeline_mode = #tpu.pipeline_mode<synchronous>, transform_indices = @transform_2, window_bounds = array<i64: 1, 128>}, {pipeline_mode = #tpu.pipeline_mode<synchronous>, transform_indices = @transform_3, window_bounds = array<i64: 128, 32>}, {pipeline_mode = #tpu.pipeline_mode<synchronous>, transform_indices = @transform_4, window_bounds = array<i64: 1, 32>}, {transform_indices = @transform_5, window_bounds = array<i64: 16, 32>}]} {
    %c0 = arith.constant 0 : index
    %c0_0 = arith.constant 0 : index
    %0 = vector.load %arg1[%c0, %c0_0] : memref<16x32xf32, #tpu.memory_space<vmem>>, vector<16x32xf32>
    %1 = arith.truncf %0 : vector<16x32xf32> to vector<16x32xbf16>
    %c0_1 = arith.constant 0 : index
    %c0_2 = arith.constant 0 : index
    %2 = vector.load %arg2[%c0_1, %c0_2] : memref<32x128xbf16, #tpu.memory_space<vmem>>, vector<32x128xbf16>
    %cst = arith.constant dense<0.000000e+00> : vector<16x128xf32>
    %3 = tpu.matmul %1, %2, %cst {dimension_numbers = #tpu.dot_dimension_numbers<[1], [0], [0], [1], [0, 0, 1, 1], [], []>} : vector<16x32xbf16>, vector<32x128xbf16>, vector<16x128xf32> -> vector<16x128xf32>
    %c0_3 = arith.constant 0 : index
    %c0_4 = arith.constant 0 : index
    %4 = vector.load %arg3[%c0_3, %c0_4] : memref<1x128xf32, #tpu.memory_space<vmem>>, vector<1x128xf32>
    %5 = vector.broadcast %4 : vector<1x128xf32> to vector<16x128xf32>
    %6 = arith.addf %3, %5 : vector<16x128xf32>
    %7 = arith.mulf %6, %6 : vector<16x128xf32>
    %8 = arith.mulf %6, %7 : vector<16x128xf32>
    %cst_5 = arith.constant 4.471500e-02 : f32
    %9 = vector.broadcast %cst_5 : f32 to vector<16x128xf32>
    %10 = arith.mulf %9, %8 : vector<16x128xf32>
    %11 = arith.addf %6, %10 : vector<16x128xf32>
    %cst_6 = arith.constant 0.797884583 : f32
    %12 = vector.broadcast %cst_6 : f32 to vector<16x128xf32>
    %13 = arith.mulf %12, %11 : vector<16x128xf32>
    %14 = math.tanh %13 : vector<16x128xf32>
    %cst_7 = arith.constant 1.000000e+00 : f32
    %15 = vector.broadcast %cst_7 : f32 to vector<16x128xf32>
    %16 = arith.addf %15, %14 : vector<16x128xf32>
    %cst_8 = arith.constant 5.000000e-01 : f32
    %17 = vector.broadcast %cst_8 : f32 to vector<16x128xf32>
    %18 = arith.mulf %17, %16 : vector<16x128xf32>
    %19 = arith.mulf %6, %18 : vector<16x128xf32>
    %20 = arith.truncf %19 : vector<16x128xf32> to vector<16x128xbf16>
    %c0_9 = arith.constant 0 : index
    %c0_10 = arith.constant 0 : index
    %21 = vector.load %arg4[%c0_9, %c0_10] : memref<128x32xbf16, #tpu.memory_space<vmem>>, vector<128x32xbf16>
    %cst_11 = arith.constant dense<0.000000e+00> : vector<16x32xf32>
    %22 = tpu.matmul %20, %21, %cst_11 {dimension_numbers = #tpu.dot_dimension_numbers<[1], [0], [0], [1], [0, 0, 1, 1], [], []>} : vector<16x128xbf16>, vector<128x32xbf16>, vector<16x32xf32> -> vector<16x32xf32>
    %c0_12 = arith.constant 0 : index
    %c0_13 = arith.constant 0 : index
    %23 = vector.load %arg5[%c0_12, %c0_13] : memref<1x32xf32, #tpu.memory_space<vmem>>, vector<1x32xf32>
    %24 = vector.broadcast %23 : vector<1x32xf32> to vector<16x32xf32>
    %25 = arith.addf %22, %24 : vector<16x32xf32>
    %c0_14 = arith.constant 0 : index
    %c0_15 = arith.constant 0 : index
    %26 = vector.load %arg6[%c0_14, %c0_15] : memref<16x32xf32, #tpu.memory_space<vmem>>, vector<16x32xf32>
    tpu.vector_store %arg6[%c0_14, %c0_15], %25 {strides = array<i32>} : memref<16x32xf32, #tpu.memory_space<vmem>>, vector<16x32xf32>,
    return
  }
  func.func @transform_0(%arg0: i32) -> (i32, i32) {
    %c0_i32 = arith.constant 0 : i32
    %c0_i32_0 = arith.constant 0 : i32
    return %arg0, %c0_i32 : i32, i32
  }
  func.func @transform_1(%arg0: i32) -> (i32, i32) {
    %c0_i32 = arith.constant 0 : i32
    %c0_i32_0 = arith.constant 0 : i32
    %c0_i32_1 = arith.constant 0 : i32
    return %c0_i32, %c0_i32_0 : i32, i32
  }
  func.func @transform_2(%arg0: i32) -> (i32, i32) {
    %c0_i32 = arith.constant 0 : i32
    %c0_i32_0 = arith.constant 0 : i32
    %c0_i32_1 = arith.constant 0 : i32
    return %c0_i32, %c0_i32_0 : i32, i32
  }
  func.func @transform_3(%arg0: i32) -> (i32, i32) {
    %c0_i32 = arith.constant 0 : i32
    %c0_i32_0 = arith.constant 0 : i32
    %c0_i32_1 = arith.constant 0 : i32
    return %c0_i32, %c0_i32_0 : i32, i32
  }
  func.func @transform_4(%arg0: i32) -> (i32, i32) {
    %c0_i32 = arith.constant 0 : i32
    %c0_i32_0 = arith.constant 0 : i32
    %c0_i32_1 = arith.constant 0 : i32
    return %c0_i32, %c0_i32_0 : i32, i32
  }
  func.func @transform_5(%arg0: i32) -> (i32, i32) {
    %c0_i32 = arith.constant 0 : i32
    %c0_i32_0 = arith.constant 0 : i32
    return %arg0, %c0_i32 : i32, i32
  }
}

</mosaic_0001>

<llo_original>
// kernel: _lambda_.1
$region0: #{_lambda_.1}
  #allocation0 [shape = 'u32[]', space=smem, size = 0x4, offset = 0x4, fixed_abs, tag = 'smem constant byte address 0x4 - core index']
  #allocation1 [shape = 'u32[144,128]{1,0:T(1,128)}', space=vmem, size = 0x12000, scoped, tag = 'internal scratch']
  %s0 = inlined_call_operand.hbm [shape: f32[16,32], index: 0, kind: input, shape index: {}]
  %s1 = inlined_call_operand.vmem [shape: bf16[32,128], index: 1, kind: input, shape index: {}]
  %s2 = inlined_call_operand.vmem [shape: f32[1,128], index: 2, kind: input, shape index: {}]
  %s3 = inlined_call_operand.hbm [shape: bf16[128,32], index: 3, kind: input, shape index: {}]
  %s4 = inlined_call_operand.vmem [shape: f32[1,32], index: 4, kind: input, shape index: {}]
  %s5 = inlined_call_operand.hbm [shape: f32[16,32], index: 5, kind: output, shape index: {}]
  %s6 = sld [smem:[#allocation0]]
  $region38: #{_lambda_.1} parent=0
    _
  %s8 = ssub.s32 1, %s6
  %s9 = scalar_select 0, %s8, %s6
  $region1: #{_lambda_.1} parent=0
    #allocation2 [shape = 'u8[8192]{0}', space=vmem, size = 0x2000, scoped, tag = 'input window, operand 0, single buffered']
    #allocation3 [shape = 's32[1]{0}', space=sflag, size = 0x4, scoped, tag = 'scoped memory for _lambda_.1']
    #allocation4 [shape = 's32[1]{0}', space=sflag, size = 0x4, scoped, tag = 'scoped memory for _lambda_.1']
    #allocation5 [shape = 'u8[32768]{0}', space=vmem, size = 0x8000, scoped, tag = 'input window, operand 3, single buffered']
    #allocation6 [shape = 's32[1]{0}', space=sflag, size = 0x4, scoped, tag = 'scoped memory for _lambda_.1']
    #allocation7 [shape = 'u8[8192]{0}', space=vmem, size = 0x2000, scoped, tag = 'output window, operand 0, single buffered']
    %10 = vsyncpa [#allocation3], 0
    %11 = vsyncpa [#allocation6], 0
    %12 = vsyncpa [#allocation4], 0
    // Predicated region
    $region2: #{_lambda_.1} parent=1 // pred_check
      _
    $region3: #{_lambda_.1} parent=1 // pred_check_branch
      %14 = sbr.rel (0) target = $region5
    $region4: #{_lambda_.1} parent=1 // pred_region
      %s16 = ssub.s32 256, 256
      %17 = vsyncadd [#allocation3], %s16
      %s18 = sshll.u32 [#allocation2], 4
      %s19 = int_to_ptr.vmem [resolvable:$true] %s18
      %24 = dma.hbm_to_vmem [thread:$0]  %s0, 256, %s19, [#allocation3], 128, 128, 8
    $region5: #{_lambda_.1} parent=1 // pred_fallthru
      _
    // Predicated region
    $region6: #{_lambda_.1} parent=1 // pred_check
      _
    $region7: #{_lambda_.1} parent=1 // pred_check_branch
      %26 = sbr.rel (0) target = $region9
    $region8: #{_lambda_.1} parent=1 // pred_region
      _
    $region9: #{_lambda_.1} parent=1 // pred_fallthru
      _
    // Predicated region
    $region10: #{_lambda_.1} parent=1 // pred_check
      _
    $region11: #{_lambda_.1} parent=1 // pred_check_branch
      %28 = sbr.rel (0) target = $region13
    $region12: #{_lambda_.1} parent=1 // pred_region
      _
    $region13: #{_lambda_.1} parent=1 // pred_fallthru
      _
    // Predicated region
    $region14: #{_lambda_.1} parent=1 // pred_check
      _
    $region15: #{_lambda_.1} parent=1 // pred_check_branch
      %30 = sbr.rel (0) target = $region17
    $region16: #{_lambda_.1} parent=1 // pred_region
      %s32 = ssub.s32 1024, 1024
      %33 = vsyncadd [#allocation6], %s32
      %s34 = sshll.u32 [#allocation5], 4
      %s35 = int_to_ptr.vmem [resolvable:$true] %s34
      %40 = dma.hbm_to_vmem [thread:$0]  %s3, 1024, %s35, [#allocation6], 64, 64, 4
    $region17: #{_lambda_.1} parent=1 // pred_fallthru
      _
    // Predicated region
    $region18: #{_lambda_.1} parent=1 // pred_check
      _
    $region19: #{_lambda_.1} parent=1 // pred_check_branch
      %42 = sbr.rel (0) target = $region21
    $region20: #{_lambda_.1} parent=1 // pred_region
      _
    $region21: #{_lambda_.1} parent=1 // pred_fallthru
      _
    // Predicated region
    $region22: #{_lambda_.1} parent=1 // pred_check
      _
    $region23: #{_lambda_.1} parent=1 // pred_check_branch
      %44 = sbr.rel (0) target = $region25
    $region24: #{_lambda_.1} parent=1 // pred_region
      %45 = dma.done [#allocation3], 256
    $region25: #{_lambda_.1} parent=1 // pred_fallthru
      _
    // Predicated region
    $region26: #{_lambda_.1} parent=1 // pred_check
      _
    $region27: #{_lambda_.1} parent=1 // pred_check_branch
      %47 = sbr.rel (0) target = $region29
    $region28: #{_lambda_.1} parent=1 // pred_region
      %48 = dma.done [#allocation6], 1024
    $region29: #{_lambda_.1} parent=1 // pred_fallthru
      _
    %v50 = vld [vmem:[#allocation2] sm:$0xff]
    %v51 = vld [vmem:[#allocation2 + $0x8] sm:$0xff]
    %v52 = vpack.c.bf16 %v51, %v50
    %v53 = vld [vmem:[%s1] sm:$0xf]
    %v54 = vld [vmem:[%s1 + $0x4] sm:$0xf]
    %v55 = vld [vmem:[%s1 + $0x8] sm:$0xf]
    %v56 = vld [vmem:[%s1 + $0xc] sm:$0xf]
    %v57 = vld [vmem:[%s2] sm:$0x1]
    %v59 = vlaneseq
    %v60 = vshrl.u32 %v59, 7
    %v61 = vsub.s32 0, %v60
    %v62 = vrot.slane %v57, %v61
    %v68 = vunpack.c.l.b16 %v53
    %v69 = vunpack.c.l.b16 %v54
    %v70 = vunpack.c.l.b16 %v55
    %v71 = vunpack.c.l.b16 %v56
    %v72 = vpack.c.b16 %v69, %v68
    %v73 = vpack.c.b16 %v71, %v70
    %vm76 = vcmask 261120
    %v78 = vsel %vm76, %v52, 0
    %80 = vmatprep.subr.bf16.mxu0 0
    %81 = vmatpush1.bf16.msra.mxu0 %v72
    %82 = vmatprep.subr.bf16.mxu0 0
    %83 = vmatpush1.bf16.msra.mxu0 %v73
    %84 = vmatprep.subr.bf16.mxu0 0
    %85 = vmatpush1.bf16.msra.mxu0 0
    %86 = vmatprep.subr.bf16.mxu0 0
    %87 = vmatpush1.bf16.msra.mxu0 0
    %88 = vmatprep.subr.bf16.mxu0 0
    %89 = vmatpush1.bf16.msra.mxu0 0
    %90 = vmatprep.subr.bf16.mxu0 0
    %91 = vmatpush1.bf16.msra.mxu0 0
    %92 = vmatprep.subr.bf16.mxu0 0
    %93 = vmatpush1.bf16.msra.mxu0 0
    %94 = vmatprep.subr.bf16.mxu0 0
    %95 = vmatpush1.bf16.msra.mxu0 0
    %96 = vmatprep.subr.bf16.mxu0 0
    %97 = vmatpush1.bf16.msra.mxu0 0
    %98 = vmatprep.subr.bf16.mxu0 0
    %99 = vmatpush1.bf16.msra.mxu0 0
    %100 = vmatprep.subr.bf16.mxu0 0
    %101 = vmatpush1.bf16.msra.mxu0 0
    %102 = vmatprep.subr.bf16.mxu0 0
    %103 = vmatpush1.bf16.msra.mxu0 0
    %104 = vmatprep.subr.bf16.mxu0 0
    %105 = vmatpush1.bf16.msra.mxu0 0
    %106 = vmatprep.subr.bf16.mxu0 0
    %107 = vmatpush1.bf16.msra.mxu0 0
    %108 = vmatprep.subr.bf16.mxu0 0
    %109 = vmatpush1.bf16.msra.mxu0 0
    %110 = vmatprep.subr.bf16.mxu0 0
    %111 = vmatpush1.bf16.msra.mxu0 0
    %112 = vmatprep.mubr.bf16.mxu0 0
    %113 = vmatmul.mubr.bf16.gmra.mrb[0].mxu0 %v78
    %v114 = vpop.f32.mrb[0].mxu0
    %v115 = vadd.f32 %v62, %v114
    %v116 = vpop.f32.mrb[0].mxu0
    %v117 = vpop.f32.mrb[0].mxu0
    %v118 = vadd.f32 %v62, %v117
    %v119 = vpop.f32.mrb[0].mxu0
    %120 = vdwg.mxu0
    %v121 = vmul.f32 %v115, %v115
    %v122 = vmul.f32 %v118, %v118
    %v123 = vmul.f32 %v115, %v121
    %v124 = vmul.f32 %v118, %v122
    %v125 = vmul.f32 %v123, 0.044715
    %v126 = vmul.f32 %v124, 0.044715
    %v127 = vadd.f32 %v115, %v125
    %v128 = vadd.f32 %v118, %v126
    %v129 = vmul.f32 %v127, 0.7978846
    %v130 = vmul.f32 %v128, 0.7978846
    %v131 = vtanh.pop %v129
    %v132 = vtanh.pop %v130
    %v133 = vadd.f32 %v131, 1.0
    %v134 = vadd.f32 %v132, 1.0
    %v135 = vmul.f32 %v133, 0.5
    %v136 = vmul.f32 %v134, 0.5
    %v137 = vmul.f32 %v115, %v135
    %v138 = vmul.f32 %v118, %v136
    %v139 = vpack.c.bf16 %v138, %v137
    %v140 = vld [vmem:[#allocation5] sm:$0xf]
    %v141 = vld [vmem:[#allocation5 + $0x4] sm:$0xf]
    %v142 = vld [vmem:[#allocation5 + $0x8] sm:$0xf]
    %v143 = vld [vmem:[#allocation5 + $0xc] sm:$0xf]
    %v144 = vld [vmem:[#allocation5 + $0x10] sm:$0xf]
    %v145 = vld [vmem:[#allocation5 + $0x14] sm:$0xf]
    %v146 = vld [vmem:[#allocation5 + $0x18] sm:$0xf]
    %v147 = vld [vmem:[#allocation5 + $0x1c] sm:$0xf]
    %v148 = vld [vmem:[#allocation5 + $0x20] sm:$0xf]
    %v149 = vld [vmem:[#allocation5 + $0x24] sm:$0xf]
    %v150 = vld [vmem:[#allocation5 + $0x28] sm:$0xf]
    %v151 = vld [vmem:[#allocation5 + $0x2c] sm:$0xf]
    %v152 = vld [vmem:[#allocation5 + $0x30] sm:$0xf]
    %v153 = vld [vmem:[#allocation5 + $0x34] sm:$0xf]
    %v154 = vld [vmem:[#allocation5 + $0x38] sm:$0xf]
    %v155 = vld [vmem:[#allocation5 + $0x3c] sm:$0xf]
    %v156 = vld [vmem:[%s4] sm:$0x1]
    %v158 = vlaneseq
    %v159 = vshrl.u32 %v158, 7
    %v160 = vsub.s32 0, %v159
    %v161 = vrot.slane %v156, %v160
    %v179 = vunpack.c.l.b16 %v140
    %v180 = vunpack.c.l.b16 %v141
    %v181 = vunpack.c.l.b16 %v142
    %v182 = vunpack.c.l.b16 %v143
    %v183 = vunpack.c.l.b16 %v144
    %v184 = vunpack.c.l.b16 %v145
    %v185 = vunpack.c.l.b16 %v146
    %v186 = vunpack.c.l.b16 %v147
    %v187 = vunpack.c.l.b16 %v148
    %v188 = vunpack.c.l.b16 %v149
    %v189 = vunpack.c.l.b16 %v150
    %v190 = vunpack.c.l.b16 %v151
    %v191 = vunpack.c.l.b16 %v152
    %v192 = vunpack.c.l.b16 %v153
    %v193 = vunpack.c.l.b16 %v154
    %v194 = vunpack.c.l.b16 %v155
    %v195 = vpack.c.b16 %v180, %v179
    %v196 = vpack.c.b16 %v182, %v181
    %v197 = vpack.c.b16 %v184, %v183
    %v198 = vpack.c.b16 %v186, %v185
    %v199 = vpack.c.b16 %v188, %v187
    %v200 = vpack.c.b16 %v190, %v189
    %v201 = vpack.c.b16 %v192, %v191
    %v202 = vpack.c.b16 %v194, %v193
    %211 = vmatprep.subr.bf16.mxu0 0
    %212 = vmatpush1.bf16.msra.mxu0 %v195
    %213 = vmatprep.subr.bf16.mxu0 0
    %214 = vmatpush1.bf16.msra.mxu0 %v196
    %215 = vmatprep.subr.bf16.mxu0 0
    %216 = vmatpush1.bf16.msra.mxu0 %v197
    %217 = vmatprep.subr.bf16.mxu0 0
    %218 = vmatpush1.bf16.msra.mxu0 %v198
    %219 = vmatprep.subr.bf16.mxu0 0
    %220 = vmatpush1.bf16.msra.mxu0 %v199
    %221 = vmatprep.subr.bf16.mxu0 0
    %222 = vmatpush1.bf16.msra.mxu0 %v200
    %223 = vmatprep.subr.bf16.mxu0 0
    %224 = vmatpush1.bf16.msra.mxu0 %v201
    %225 = vmatprep.subr.bf16.mxu0 0
    %226 = vmatpush1.bf16.msra.mxu0 %v202
    %227 = vmatprep.subr.bf16.mxu0 0
    %228 = vmatpush1.bf16.msra.mxu0 0
    %229 = vmatprep.subr.bf16.mxu0 0
    %230 = vmatpush1.bf16.msra.mxu0 0
    %231 = vmatprep.subr.bf16.mxu0 0
    %232 = vmatpush1.bf16.msra.mxu0 0
    %233 = vmatprep.subr.bf16.mxu0 0
    %234 = vmatpush1.bf16.msra.mxu0 0
    %235 = vmatprep.subr.bf16.mxu0 0
    %236 = vmatpush1.bf16.msra.mxu0 0
    %237 = vmatprep.subr.bf16.mxu0 0
    %238 = vmatpush1.bf16.msra.mxu0 0
    %239 = vmatprep.subr.bf16.mxu0 0
    %240 = vmatpush1.bf16.msra.mxu0 0
    %241 = vmatprep.subr.bf16.mxu0 0
    %242 = vmatpush1.bf16.msra.mxu0 0
    %243 = vmatprep.mubr.bf16.mxu0 0
    %244 = vmatmul.mubr.bf16.gmra.mrb[0].mxu0 %v139
    %v245 = vpop.f32.mrb[0].mxu0
    %v246 = vadd.f32 %v161, %v245
    %v247 = vpop.f32.mrb[0].mxu0
    %v248 = vpop.f32.mrb[0].mxu0
    %v249 = vadd.f32 %v161, %v248
    %v250 = vpop.f32.mrb[0].mxu0
    %251 = vdwg.mxu0
    %252 = vst.msk [vmem:[#allocation7] sm:$0xff] %vm76, %v246
    %253 = vst.msk [vmem:[#allocation7 + $0x8] sm:$0xff] %vm76, %v249
    // Predicated region
    $region30: #{_lambda_.1} parent=1 // pred_check
      _
    $region31: #{_lambda_.1} parent=1 // pred_check_branch
      %255 = sbr.rel (0) target = $region33
    $region32: #{_lambda_.1} parent=1 // pred_region
      %s257 = ssub.s32 256, 256
      %258 = vsyncadd [#allocation4], %s257
      %s259 = sshll.u32 [#allocation7], 4
      %s260 = int_to_ptr.vmem [resolvable:$true] %s259
      %265 = dma.vmem_to_hbm [thread:$0]  %s260, 256, %s5, [#allocation4], 128, 128, 8
    $region33: #{_lambda_.1} parent=1 // pred_fallthru
      _
    // Predicated region
    $region34: #{_lambda_.1} parent=1 // pred_check
      _
    $region35: #{_lambda_.1} parent=1 // pred_check_branch
      %267 = sbr.rel (0) target = $region37
    $region36: #{_lambda_.1} parent=1 // pred_region
      %268 = dma.done [#allocation4], 256
    $region37: #{_lambda_.1} parent=1 // pred_fallthru
      _
    %269 = vsyncpa [#allocation3], 1
    %270 = vsyncpa [#allocation6], 1
    %271 = vsyncpa [#allocation4], 1

// kernel: _lambda_.1
$region0: #{_lambda_.1}
  #allocation0 [shape = 'u32[]', space=smem, size = 0x4, offset = 0x4, fixed_abs, tag = 'smem constant byte address 0x4 - core index']
  #allocation1 [shape = 'u32[144,128]{1,0:T(1,128)}', space=vmem, size = 0x12000, scoped, tag = 'internal scratch']
  %s0 = inlined_call_operand.hbm [shape: f32[16,32], index: 0, kind: input, shape index: {}]
  %s1 = inlined_call_operand.vmem [shape: bf16[32,128], index: 1, kind: input, shape index: {}]
  %s2 = inlined_call_operand.vmem [shape: f32[1,128], index: 2, kind: input, shape index: {}]
  %s3 = inlined_call_operand.hbm [shape: bf16[128,32], index: 3, kind: input, shape index: {}]
  %s4 = inlined_call_operand.vmem [shape: f32[1,32], index: 4, kind: input, shape index: {}]
  %s5 = inlined_call_operand.hbm [shape: f32[16,32], index: 5, kind: output, shape index: {}]
  %s6 = sld [smem:[#allocation0]]
  $region38: #{_lambda_.1} parent=0
    _
  %s8 = ssub.s32 1, %s6
  %s9 = scalar_select 0, %s8, %s6
  $region1: #{_lambda_.1} parent=0
    #allocation2 [shape = 'u8[8192]{0}', space=vmem, size = 0x2000, scoped, tag = 'input window, operand 0, single buffered']
    #allocation3 [shape = 's32[1]{0}', space=sflag, size = 0x4, scoped, tag = 'scoped memory for _lambda_.1']
    #allocation4 [shape = 's32[1]{0}', space=sflag, size = 0x4, scoped, tag = 'scoped memory for _lambda_.1']
    #allocation5 [shape = 'u8[32768]{0}', space=vmem, size = 0x8000, scoped, tag = 'input window, operand 3, single buffered']
    #allocation6 [shape = 's32[1]{0}', space=sflag, size = 0x4, scoped, tag = 'scoped memory for _lambda_.1']
    #allocation7 [shape = 'u8[8192]{0}', space=vmem, size = 0x2000, scoped, tag = 'output window, operand 0, single buffered']
    %10 = vsyncpa [#allocation3], 0
    %11 = vsyncpa [#allocation6], 0
    %12 = vsyncpa [#allocation4], 0
    // Predicated region
    $region2: #{_lambda_.1} parent=1 // pred_check
      _
    $region3: #{_lambda_.1} parent=1 // pred_check_branch
      %14 = sbr.rel (0) target = $region5
    $region4: #{_lambda_.1} parent=1 // pred_region
      %s16 = ssub.s32 256, 256
      %17 = vsyncadd [#allocation3], %s16
      %s18 = sshll.u32 [#allocation2], 4
      %s19 = int_to_ptr.vmem [resolvable:$true] %s18
      %24 = dma.hbm_to_vmem [thread:$0]  %s0, 256, %s19, [#allocation3], 128, 128, 8
    $region5: #{_lambda_.1} parent=1 // pred_fallthru
      _
    // Predicated region
    $region6: #{_lambda_.1} parent=1 // pred_check
      _
    $region7: #{_lambda_.1} parent=1 // pred_check_branch
      %26 = sbr.rel (0) target = $region9
    $region8: #{_lambda_.1} parent=1 // pred_region
      _
    $region9: #{_lambda_.1} parent=1 // pred_fallthru
      _
    // Predicated region
    $region10: #{_lambda_.1} parent=1 // pred_check
      _
    $region11: #{_lambda_.1} parent=1 // pred_check_branch
      %28 = sbr.rel (0) target = $region13
    $region12: #{_lambda_.1} parent=1 // pred_region
      _
    $region13: #{_lambda_.1} parent=1 // pred_fallthru
      _
    // Predicated region
    $region14: #{_lambda_.1} parent=1 // pred_check
      _
    $region15: #{_lambda_.1} parent=1 // pred_check_branch
      %30 = sbr.rel (0) target = $region17
    $region16: #{_lambda_.1} parent=1 // pred_region
      %s32 = ssub.s32 1024, 1024
      %33 = vsyncadd [#allocation6], %s32
      %s34 = sshll.u32 [#allocation5], 4
      %s35 = int_to_ptr.vmem [resolvable:$true] %s34
      %40 = dma.hbm_to_vmem [thread:$0]  %s3, 1024, %s35, [#allocation6], 64, 64, 4
    $region17: #{_lambda_.1} parent=1 // pred_fallthru
      _
    // Predicated region
    $region18: #{_lambda_.1} parent=1 // pred_check
      _
    $region19: #{_lambda_.1} parent=1 // pred_check_branch
      %42 = sbr.rel (0) target = $region21
    $region20: #{_lambda_.1} parent=1 // pred_region
      _
    $region21: #{_lambda_.1} parent=1 // pred_fallthru
      _
    // Predicated region
    $region22: #{_lambda_.1} parent=1 // pred_check
      _
    $region23: #{_lambda_.1} parent=1 // pred_check_branch
      %44 = sbr.rel (0) target = $region25
    $region24: #{_lambda_.1} parent=1 // pred_region
      %45 = dma.done [#allocation3], 256
    $region25: #{_lambda_.1} parent=1 // pred_fallthru
      _
    // Predicated region
    $region26: #{_lambda_.1} parent=1 // pred_check
      _
    $region27: #{_lambda_.1} parent=1 // pred_check_branch
      %47 = sbr.rel (0) target = $region29
    $region28: #{_lambda_.1} parent=1 // pred_region
      %48 = dma.done [#allocation6], 1024
    $region29: #{_lambda_.1} parent=1 // pred_fallthru
      _
    %v50 = vld [vmem:[#allocation2] sm:$0xff]
    %v51 = vld [vmem:[#allocation2 + $0x8] sm:$0xff]
    %v52 = vpack.c.bf16 %v51, %v50
    %v53 = vld [vmem:[%s1] sm:$0xf]
    %v54 = vld [vmem:[%s1 + $0x4] sm:$0xf]
    %v55 = vld [vmem:[%s1 + $0x8] sm:$0xf]
    %v56 = vld [vmem:[%s1 + $0xc] sm:$0xf]
    %v57 = vld [vmem:[%s2] sm:$0x1]
    %v59 = vlaneseq
    %v60 = vshrl.u32 %v59, 7
    %v61 = vsub.s32 0, %v60
    %v62 = vrot.slane %v57, %v61
    %v68 = vunpack.c.l.b16 %v53
    %v69 = vunpack.c.l.b16 %v54
    %v70 = vunpack.c.l.b16 %v55
    %v71 = vunpack.c.l.b16 %v56
    %v72 = vpack.c.b16 %v69, %v68
    %v73 = vpack.c.b16 %v71, %v70
    %vm76 = vcmask 261120
    %v78 = vsel %vm76, %v52, 0
    %80 = vmatprep.subr.bf16.mxu0 0
    %81 = vmatpush1.bf16.msra.mxu0 %v72
    %82 = vmatprep.subr.bf16.mxu0 0
    %83 = vmatpush1.bf16.msra.mxu0 %v73
    %84 = vmatprep.subr.bf16.mxu0 0
    %85 = vmatpush1.bf16.msra.mxu0 0
    %86 = vmatprep.subr.bf16.mxu0 0
    %87 = vmatpush1.bf16.msra.mxu0 0
    %88 = vmatprep.subr.bf16.mxu0 0
    %89 = vmatpush1.bf16.msra.mxu0 0
    %90 = vmatprep.subr.bf16.mxu0 0
    %91 = vmatpush1.bf16.msra.mxu0 0
    %92 = vmatprep.subr.bf16.mxu0 0
    %93 = vmatpush1.bf16.msra.mxu0 0
    %94 = vmatprep.subr.bf16.mxu0 0
    %95 = vmatpush1.bf16.msra.mxu0 0
    %96 = vmatprep.subr.bf16.mxu0 0
    %97 = vmatpush1.bf16.msra.mxu0 0
    %98 = vmatprep.subr.bf16.mxu0 0
    %99 = vmatpush1.bf16.msra.mxu0 0
    %100 = vmatprep.subr.bf16.mxu0 0
    %101 = vmatpush1.bf16.msra.mxu0 0
    %102 = vmatprep.subr.bf16.mxu0 0
    %103 = vmatpush1.bf16.msra.mxu0 0
    %104 = vmatprep.subr.bf16.mxu0 0
    %105 = vmatpush1.bf16.msra.mxu0 0
    %106 = vmatprep.subr.bf16.mxu0 0
    %107 = vmatpush1.bf16.msra.mxu0 0
    %108 = vmatprep.subr.bf16.mxu0 0
    %109 = vmatpush1.bf16.msra.mxu0 0
    %110 = vmatprep.subr.bf16.mxu0 0
    %111 = vmatpush1.bf16.msra.mxu0 0
    %112 = vmatprep.mubr.bf16.mxu0 0
    %113 = vmatmul.mubr.bf16.gmra.mrb[0].mxu0 %v78
    %v114 = vpop.f32.mrb[0].mxu0
    %v115 = vadd.f32 %v62, %v114
    %v116 = vpop.f32.mrb[0].mxu0
    %v117 = vpop.f32.mrb[0].mxu0
    %v118 = vadd.f32 %v62, %v117
    %v119 = vpop.f32.mrb[0].mxu0
    %120 = vdwg.mxu0
    %v121 = vmul.f32 %v115, %v115
    %v122 = vmul.f32 %v118, %v118
    %v123 = vmul.f32 %v115, %v121
    %v124 = vmul.f32 %v118, %v122
    %v125 = vmul.f32 %v123, 0.044715
    %v126 = vmul.f32 %v124, 0.044715
    %v127 = vadd.f32 %v115, %v125
    %v128 = vadd.f32 %v118, %v126
    %v129 = vmul.f32 %v127, 0.7978846
    %v130 = vmul.f32 %v128, 0.7978846
    %v131 = vtanh.pop %v129
    %v132 = vtanh.pop %v130
    %v133 = vadd.f32 %v131, 1.0
    %v134 = vadd.f32 %v132, 1.0
    %v135 = vmul.f32 %v133, 0.5
    %v136 = vmul.f32 %v134, 0.5
    %v137 = vmul.f32 %v115, %v135
    %v138 = vmul.f32 %v118, %v136
    %v139 = vpack.c.bf16 %v138, %v137
    %v140 = vld [vmem:[#allocation5] sm:$0xf]
    %v141 = vld [vmem:[#allocation5 + $0x4] sm:$0xf]
    %v142 = vld [vmem:[#allocation5 + $0x8] sm:$0xf]
    %v143 = vld [vmem:[#allocation5 + $0xc] sm:$0xf]
    %v144 = vld [vmem:[#allocation5 + $0x10] sm:$0xf]
    %v145 = vld [vmem:[#allocation5 + $0x14] sm:$0xf]
    %v146 = vld [vmem:[#allocation5 + $0x18] sm:$0xf]
    %v147 = vld [vmem:[#allocation5 + $0x1c] sm:$0xf]
    %v148 = vld [vmem:[#allocation5 + $0x20] sm:$0xf]
    %v149 = vld [vmem:[#allocation5 + $0x24] sm:$0xf]
    %v150 = vld [vmem:[#allocation5 + $0x28] sm:$0xf]
    %v151 = vld [vmem:[#allocation5 + $0x2c] sm:$0xf]
    %v152 = vld [vmem:[#allocation5 + $0x30] sm:$0xf]
    %v153 = vld [vmem:[#allocation5 + $0x34] sm:$0xf]
    %v154 = vld [vmem:[#allocation5 + $0x38] sm:$0xf]
    %v155 = vld [vmem:[#allocation5 + $0x3c] sm:$0xf]
    %v156 = vld [vmem:[%s4] sm:$0x1]
    %v158 = vlaneseq
    %v159 = vshrl.u32 %v158, 7
    %v160 = vsub.s32 0, %v159
    %v161 = vrot.slane %v156, %v160
    %v179 = vunpack.c.l.b16 %v140
    %v180 = vunpack.c.l.b16 %v141
    %v181 = vunpack.c.l.b16 %v142
    %v182 = vunpack.c.l.b16 %v143
    %v183 = vunpack.c.l.b16 %v144
    %v184 = vunpack.c.l.b16 %v145
    %v185 = vunpack.c.l.b16 %v146
    %v186 = vunpack.c.l.b16 %v147
    %v187 = vunpack.c.l.b16 %v148
    %v188 = vunpack.c.l.b16 %v149
    %v189 = vunpack.c.l.b16 %v150
    %v190 = vunpack.c.l.b16 %v151
    %v191 = vunpack.c.l.b16 %v152
    %v192 = vunpack.c.l.b16 %v153
    %v193 = vunpack.c.l.b16 %v154
    %v194 = vunpack.c.l.b16 %v155
    %v195 = vpack.c.b16 %v180, %v179
    %v196 = vpack.c.b16 %v182, %v181
    %v197 = vpack.c.b16 %v184, %v183
    %v198 = vpack.c.b16 %v186, %v185
    %v199 = vpack.c.b16 %v188, %v187
    %v200 = vpack.c.b16 %v190, %v189
    %v201 = vpack.c.b16 %v192, %v191
    %v202 = vpack.c.b16 %v194, %v193
    %211 = vmatprep.subr.bf16.mxu0 0
    %212 = vmatpush1.bf16.msra.mxu0 %v195
    %213 = vmatprep.subr.bf16.mxu0 0
    %214 = vmatpush1.bf16.msra.mxu0 %v196
    %215 = vmatprep.subr.bf16.mxu0 0
    %216 = vmatpush1.bf16.msra.mxu0 %v197
    %217 = vmatprep.subr.bf16.mxu0 0
    %218 = vmatpush1.bf16.msra.mxu0 %v198
    %219 = vmatprep.subr.bf16.mxu0 0
    %220 = vmatpush1.bf16.msra.mxu0 %v199
    %221 = vmatprep.subr.bf16.mxu0 0
    %222 = vmatpush1.bf16.msra.mxu0 %v200
    %223 = vmatprep.subr.bf16.mxu0 0
    %224 = vmatpush1.bf16.msra.mxu0 %v201
    %225 = vmatprep.subr.bf16.mxu0 0
    %226 = vmatpush1.bf16.msra.mxu0 %v202
    %227 = vmatprep.subr.bf16.mxu0 0
    %228 = vmatpush1.bf16.msra.mxu0 0
    %229 = vmatprep.subr.bf16.mxu0 0
    %230 = vmatpush1.bf16.msra.mxu0 0
    %231 = vmatprep.subr.bf16.mxu0 0
    %232 = vmatpush1.bf16.msra.mxu0 0
    %233 = vmatprep.subr.bf16.mxu0 0
    %234 = vmatpush1.bf16.msra.mxu0 0
    %235 = vmatprep.subr.bf16.mxu0 0
    %236 = vmatpush1.bf16.msra.mxu0 0
    %237 = vmatprep.subr.bf16.mxu0 0
    %238 = vmatpush1.bf16.msra.mxu0 0
    %239 = vmatprep.subr.bf16.mxu0 0
    %240 = vmatpush1.bf16.msra.mxu0 0
    %241 = vmatprep.subr.bf16.mxu0 0
    %242 = vmatpush1.bf16.msra.mxu0 0
    %243 = vmatprep.mubr.bf16.mxu0 0
    %244 = vmatmul.mubr.bf16.gmra.mrb[0].mxu0 %v139
    %v245 = vpop.f32.mrb[0].mxu0
    %v246 = vadd.f32 %v161, %v245
    %v247 = vpop.f32.mrb[0].mxu0
    %v248 = vpop.f32.mrb[0].mxu0
    %v249 = vadd.f32 %v161, %v248
    %v250 = vpop.f32.mrb[0].mxu0
    %251 = vdwg.mxu0
    %252 = vst.msk [vmem:[#allocation7] sm:$0xff] %vm76, %v246
    %253 = vst.msk [vmem:[#allocation7 + $0x8] sm:$0xff] %vm76, %v249
    // Predicated region
    $region30: #{_lambda_.1} parent=1 // pred_check
      _
    $region31: #{_lambda_.1} parent=1 // pred_check_branch
      %255 = sbr.rel (0) target = $region33
    $region32: #{_lambda_.1} parent=1 // pred_region
      %s257 = ssub.s32 256, 256
      %258 = vsyncadd [#allocation4], %s257
      %s259 = sshll.u32 [#allocation7], 4
      %s260 = int_to_ptr.vmem [resolvable:$true] %s259
      %265 = dma.vmem_to_hbm [thread:$0]  %s260, 256, %s5, [#allocation4], 128, 128, 8
    $region33: #{_lambda_.1} parent=1 // pred_fallthru
      _
    // Predicated region
    $region34: #{_lambda_.1} parent=1 // pred_check
      _
    $region35: #{_lambda_.1} parent=1 // pred_check_branch
      %267 = sbr.rel (0) target = $region37
    $region36: #{_lambda_.1} parent=1 // pred_region
      %268 = dma.done [#allocation4], 256
    $region37: #{_lambda_.1} parent=1 // pred_fallthru
      _
    %269 = vsyncpa [#allocation3], 1
    %270 = vsyncpa [#allocation6], 1
    %271 = vsyncpa [#allocation4], 1

</llo_original>
